<compile_context>
chip_gen: v7x
topology: tpu7x:2x2x1
jax: 0.10.0
libtpu: 0.0.40
codegen_flags: <defaults>
</compile_context>

<pallas_src>
import functools

import jax
import jax.numpy as jnp
from jax.experimental import pallas as pl
from jax.experimental.pallas import tpu as pltpu


_VMEM_LIMIT = 48 * 1024 * 1024  # explicit scoped-VMEM budget; headroom under v7x's 64 MiB


# ------------------------------ tiling helper -------------------------------

def _tile(n, target, align):
    """Largest divisor of n that is <= target and a multiple of `align`.
    If n <= target (or no aligned divisor exists) return the full dim, which is
    always layout-legal on TPU (a block equal to the full array dim satisfies
    the (8,128) rule)."""
    if n <= target:
        return n
    d = (target // align) * align
    while d >= align:
        if n % d == 0:
            return d
        d -= align
    return n


# --------------------- weight-stationary linear (x@w + b) -------------------

def _linear_kernel(x_ref, w_ref, b_ref, o_ref):
    acc = jnp.dot(x_ref[...].astype(jnp.bfloat16),
                  w_ref[...].astype(jnp.bfloat16),
                  preferred_element_type=jnp.float32)
    o_ref[...] = (acc + b_ref[...].astype(jnp.float32)).astype(o_ref.dtype)


def linear(x, w, b, *, tm_target=512, tn_target=512):
    """y = x @ w + b.

    Weight-stationary: K stays whole (SAM2 dims <= ~1152 so the (tm,K)+(K,tn)
    pair is only a few MiB), grid = (N tiles, M tiles) with M innermost so the
    weight block is not re-DMA'd along the inner axis.  bf16 MXU operands,
    f32 accumulation.  (Grid-invariant blocks could additionally be marked
    single-buffered; left at the default 2-deep pipelining for portability.)"""
    M, K = x.shape
    N = w.shape[1]
    tm = _tile(M, tm_target, 8)
    tn = _tile(N, tn_target, 128)
    grid = (N // tn, M // tm)            # M innermost -> weight resident in VMEM
    itemsize = x.dtype.itemsize
    return pl.pallas_call(
        _linear_kernel,
        out_shape=jax.ShapeDtypeStruct((M, N), x.dtype),
        grid=grid,
        in_specs=[
            pl.BlockSpec((tm, K), lambda j, i: (i, 0)),
            pl.BlockSpec((K, tn), lambda j, i: (0, j)),   # invariant along i
            pl.BlockSpec((1, tn), lambda j, i: (0, j)),
        ],
        out_specs=pl.BlockSpec((tm, tn), lambda j, i: (i, j)),
        compiler_params=pltpu.CompilerParams(
            dimension_semantics=("parallel", "parallel"),
            vmem_limit_bytes=_VMEM_LIMIT),
        cost_estimate=pl.CostEstimate(
            flops=int(2 * M * N * K),
            transcendentals=0,
            bytes_accessed=int((M * K + K * N + M * N + N) * itemsize)),
    )(x, w, b.reshape(1, N))


# --------------------- flash attention (head-major layout) ------------------

def _flash_attn_kernel(q_ref, k_ref, v_ref, o_ref, m_ref, l_ref, acc_ref, qbf_ref):
    # q_ref: (tq, hd) pre-scaled; k_ref/v_ref: (tkv, hd); o_ref: (tq, hd)
    # scratch (persist across kv axis): m/l (tq,1) f32, acc (tq,hd) f32,
    # qbf (tq,hd) bf16 staged once per q tile (kv-invariant).
    ki = pl.program_id(3)

    @pl.when(ki == 0)
    def _():
        m_ref[...] = jnp.full(m_ref.shape, -jnp.inf, dtype=m_ref.dtype)
        l_ref[...] = jnp.zeros_like(l_ref)
        acc_ref[...] = jnp.zeros_like(acc_ref)
        qbf_ref[...] = q_ref[...].astype(jnp.bfloat16)

    q = qbf_ref[...]                              # (tq, hd)  bf16
    k = k_ref[...].astype(jnp.bfloat16)           # (tkv, hd) bf16
    v = v_ref[...].astype(jnp.bfloat16)           # (tkv, hd) bf16

    s = jax.lax.dot_general(q, k, (((1,), (1,)), ((), ())),
                            preferred_element_type=jnp.float32)   # (tq, tkv)

    m_prev = m_ref[...]
    m_new = jnp.maximum(m_prev, jnp.max(s, axis=-1, keepdims=True))
    alpha = jnp.exp(m_prev - m_new)               # (tq, 1)
    p = jnp.exp(s - m_new)                        # (tq, tkv)
    l_ref[...] = alpha * l_ref[...] + jnp.sum(p, axis=-1, keepdims=True)
    acc_ref[...] = alpha * acc_ref[...] + jnp.dot(
        p.astype(jnp.bfloat16), v, preferred_element_type=jnp.float32)
    m_ref[...] = m_new

    @pl.when(ki == pl.num_programs(3) - 1)
    def _():
        # Exact division in the finalize (runs once per q tile; negligible cost,
        # avoids the approximate-reciprocal error term).
        o_ref[...] = (acc_ref[...] / l_ref[...]).astype(o_ref.dtype)


def flash_attention(q, k, v, *, tq_target=256, tkv_target=512):
    """q: (B, nh, Nq, hd) pre-scaled; k, v: (B, nh, Nk, hd) -> (B, nh, Nq, hd)."""
    B, nh, Nq, hd = q.shape
    Nk = k.shape[2]
    tq = _tile(Nq, tq_target, 8)
    tkv = _tile(Nk, tkv_target, 128)
    grid = (B, nh, Nq // tq, Nk // tkv)           # kv reduction innermost
    itemsize = q.dtype.itemsize
    return pl.pallas_call(
        _flash_attn_kernel,
        out_shape=jax.ShapeDtypeStruct((B, nh, Nq, hd), q.dtype),
        grid=grid,
        in_specs=[
            pl.BlockSpec((None, None, tq, hd), lambda b, h, qi, ki: (b, h, qi, 0)),
            pl.BlockSpec((None, None, tkv, hd), lambda b, h, qi, ki: (b, h, ki, 0)),
            pl.BlockSpec((None, None, tkv, hd), lambda b, h, qi, ki: (b, h, ki, 0)),
        ],
        out_specs=pl.BlockSpec((None, None, tq, hd),
                               lambda b, h, qi, ki: (b, h, qi, 0)),
        scratch_shapes=[
            pltpu.VMEM((tq, 1), jnp.float32),     # running max
            pltpu.VMEM((tq, 1), jnp.float32),     # running denom
            pltpu.VMEM((tq, hd), jnp.float32),    # output accumulator
            pltpu.VMEM((tq, hd), jnp.bfloat16),   # staged bf16 q (kv-invariant)
        ],
        compiler_params=pltpu.CompilerParams(
            dimension_semantics=("parallel", "parallel", "parallel", "arbitrary"),
            vmem_limit_bytes=_VMEM_LIMIT),
        cost_estimate=pl.CostEstimate(
            flops=int(4 * B * nh * Nq * Nk * hd),
            transcendentals=int(B * nh * Nq * Nk),
            bytes_accessed=int((2 * B * nh * Nq * hd
                                + 2 * B * nh * Nk * hd) * itemsize)),
    )(q, k, v)


# --------------------------- module forward glue ----------------------------

def multi_scale_attention(x, params, num_heads, q_pool_stride=None):
    """Mirror of MultiScaleAttention.forward. x: (B, H, W, dim)."""
    B, H, W, dim = x.shape
    w_qkv, b_qkv = params["w_qkv"], params["b_qkv"]      # (dim, 3*dim_out), (3*dim_out,)
    w_proj, b_proj = params["w_proj"], params["b_proj"]  # (dim_out, dim_out), (dim_out,)
    dim_out = w_proj.shape[0]
    head_dim = dim_out // num_heads
    scale = head_dim ** -0.5
    N = H * W

    # Fold the attention scale into the q columns of the qkv projection
    # (zero runtime cost; commutes with the positive max-pool on q).
    w_qkv = w_qkv.at[:, :dim_out].multiply(scale)
    b_qkv = b_qkv.at[:dim_out].multiply(scale)

    # qkv = self.qkv(x) -> (B, N, 3, nh, hd)
    qkv = linear(x.reshape(B * N, dim), w_qkv, b_qkv)
    qkv = qkv.reshape(B, N, 3, num_heads, head_dim)

    # Head-major relayout (B, nh, N, hd): attention blocks become clean 2-D
    # (token_tile, hd) tiles and the head axis becomes a parallel grid axis.
    # This is XLA-side layout plumbing, not part of the hot kernel loop.
    k = jnp.transpose(qkv[:, :, 1], (0, 2, 1, 3))
    v = jnp.transpose(qkv[:, :, 2], (0, 2, 1, 3))

    Hq, Wq = H, W
    if q_pool_stride is None:
        q = jnp.transpose(qkv[:, :, 0], (0, 2, 1, 3))
    else:
        # do_pool: nn.MaxPool2d(q_pool_stride) on q only (glue, not hot path).
        # TODO(synk): the max-pool stays in plain JAX (lax.reduce_window), not Pallas.
        qs = qkv[:, :, 0].reshape(B, H, W, dim_out)
        qs = jax.lax.reduce_window(
            qs, -jnp.inf, jax.lax.max,
            window_dimensions=(1, q_pool_stride, q_pool_stride, 1),
            window_strides=(1, q_pool_stride, q_pool_stride, 1),
            padding="VALID")
        Hq, Wq = qs.shape[1], qs.shape[2]
        q = jnp.transpose(qs.reshape(B, Hq * Wq, num_heads, head_dim), (0, 2, 1, 3))

    o = flash_attention(q, k, v)                                   # (B, nh, Nq, hd)
    o = jnp.transpose(o, (0, 2, 1, 3)).reshape(B * Hq * Wq, dim_out)
    o = linear(o, w_proj, b_proj)                                  # self.proj
    return o.reshape(B, Hq, Wq, dim_out)


# --------------------------- pure-JAX reference ------------------------------

def reference(x, params, num_heads, q_pool_stride=None):
    B, H, W, dim = x.shape
    dim_out = params["w_proj"].shape[0]
    head_dim = dim_out // num_heads
    scale = head_dim ** -0.5
    qkv = x.reshape(B * H * W, dim) @ params["w_qkv"] + params["b_qkv"]
    qkv = qkv.reshape(B, H * W, 3, num_heads, head_dim)
    q, k, v = qkv[:, :, 0], qkv[:, :, 1], qkv[:, :, 2]
    Hq, Wq = H, W
    if q_pool_stride is not None:
        qs = q.reshape(B, H, W, dim_out)
        qs = jax.lax.reduce_window(
            qs, -jnp.inf, jax.lax.max,
            window_dimensions=(1, q_pool_stride, q_pool_stride, 1),
            window_strides=(1, q_pool_stride, q_pool_stride, 1),
            padding="VALID")
        Hq, Wq = qs.shape[1], qs.shape[2]
        q = qs.reshape(B, Hq * Wq, num_heads, head_dim)
    q = jnp.transpose(q, (0, 2, 1, 3))
    k = jnp.transpose(k, (0, 2, 1, 3))
    v = jnp.transpose(v, (0, 2, 1, 3))
    s = jnp.einsum("bhqd,bhkd->bhqk", q, k) * scale
    p = jax.nn.softmax(s, axis=-1)
    o = jnp.einsum("bhqk,bhkd->bhqd", p, v)
    o = jnp.transpose(o, (0, 2, 1, 3)).reshape(B * Hq * Wq, dim_out)
    o = o @ params["w_proj"] + params["b_proj"]
    return o.reshape(B, Hq, Wq, dim_out)


def init_params(key, dim, dim_out):
    """Deterministic synthetic init (nn.Linear weights stored transposed)."""
    k1, k2, k3, k4 = jax.random.split(key, 4)
    s_qkv = 1.0 / jnp.sqrt(dim)
    s_proj = 1.0 / jnp.sqrt(dim_out)
    return {
        "w_qkv": jax.random.uniform(k1, (dim, 3 * dim_out), jnp.float32, -s_qkv, s_qkv),
        "b_qkv": jax.random.uniform(k2, (3 * dim_out,), jnp.float32, -s_qkv, s_qkv),
        "w_proj": jax.random.uniform(k3, (dim_out, dim_out), jnp.float32, -s_proj, s_proj),
        "b_proj": jax.random.uniform(k4, (dim_out,), jnp.float32, -s_proj, s_proj),
    }


if __name__ == "__main__":
    B, H, W = 2, 8, 8
    dim, dim_out, num_heads = 32, 32, 2

    key = jax.random.PRNGKey(0)
    kx, kp = jax.random.split(key)
    x = jax.random.normal(kx, (B, H, W, dim), dtype=jnp.float32)
    params = init_params(kp, dim, dim_out)

    # Tolerance widened vs a pure-f32 reference because the MXU operands are
    # cast to bf16 (f32 accumulation keeps the error at the ~1e-3 level).
    TOL = 2e-2

    # default configuration: q_pool=None
    out = multi_scale_attention(x, params, num_heads, q_pool_stride=None)
    jax.block_until_ready(out)
    ref = reference(x, params, num_heads, q_pool_stride=None)
    assert out.shape == (B, H, W, dim_out)
    assert jnp.allclose(out, ref, atol=TOL, rtol=TOL)

    # q_pool = nn.MaxPool2d(kernel_size=2, stride=2) configuration
    out_p = multi_scale_attention(x, params, num_heads, q_pool_stride=2)
    jax.block_until_ready(out_p)
    ref_p = reference(x, params, num_heads, q_pool_stride=2)
    assert out_p.shape == (B, H // 2, W // 2, dim_out)
    assert jnp.allclose(out_p, ref_p, atol=TOL, rtol=TOL)

    print("KERNEL_OK")
</pallas_src>

<mosaic_0001>
module attributes {stable_mosaic.version = 11 : i64} {
  func.func @_linear_kernel(%arg0: i32, %arg1: i32, %arg2: memref<128x32xf32, #tpu.memory_space<vmem>>, %arg3: memref<32x96xf32, #tpu.memory_space<vmem>>, %arg4: memref<1x96xf32, #tpu.memory_space<vmem>>, %arg5: memref<128x96xf32, #tpu.memory_space<vmem>>) attributes {dimension_semantics = [#tpu.dimension_semantics<parallel>, #tpu.dimension_semantics<parallel>], iteration_bounds = array<i64: 1, 1>, scalar_prefetch = 0 : i64, scratch_operands = 0 : i64, tpu.core_type = #tpu.core_type<tc>, window_params = [{transform_indices = @transform_0, window_bounds = array<i64: 128, 32>}, {transform_indices = @transform_1, window_bounds = array<i64: 32, 96>}, {transform_indices = @transform_2, window_bounds = array<i64: 1, 96>}, {transform_indices = @transform_3, window_bounds = array<i64: 128, 96>}]} {
    %c0 = arith.constant 0 : index
    %c0_0 = arith.constant 0 : index
    %0 = vector.load %arg2[%c0, %c0_0] : memref<128x32xf32, #tpu.memory_space<vmem>>, vector<128x32xf32>
    %1 = arith.truncf %0 : vector<128x32xf32> to vector<128x32xbf16>
    %c0_1 = arith.constant 0 : index
    %c0_2 = arith.constant 0 : index
    %2 = vector.load %arg3[%c0_1, %c0_2] : memref<32x96xf32, #tpu.memory_space<vmem>>, vector<32x96xf32>
    %3 = arith.truncf %2 : vector<32x96xf32> to vector<32x96xbf16>
    %cst = arith.constant dense<0.000000e+00> : vector<128x96xf32>
    %4 = tpu.matmul %1, %3, %cst {dimension_numbers = #tpu.dot_dimension_numbers<[1], [0], [0], [1], [0, 0, 1, 1], [], []>} : vector<128x32xbf16>, vector<32x96xbf16>, vector<128x96xf32> -> vector<128x96xf32>
    %c0_3 = arith.constant 0 : index
    %c0_4 = arith.constant 0 : index
    %5 = vector.load %arg4[%c0_3, %c0_4] : memref<1x96xf32, #tpu.memory_space<vmem>>, vector<1x96xf32>
    %6 = vector.broadcast %5 : vector<1x96xf32> to vector<128x96xf32>
    %7 = arith.addf %4, %6 : vector<128x96xf32>
    %c0_5 = arith.constant 0 : index
    %c0_6 = arith.constant 0 : index
    %8 = vector.load %arg5[%c0_5, %c0_6] : memref<128x96xf32, #tpu.memory_space<vmem>>, vector<128x96xf32>
    tpu.vector_store %arg5[%c0_5, %c0_6], %7 {strides = array<i32>} : memref<128x96xf32, #tpu.memory_space<vmem>>, vector<128x96xf32>,
    return
  }
  func.func @transform_0(%arg0: i32, %arg1: i32) -> (i32, i32) {
    %c0_i32 = arith.constant 0 : i32
    %c0_i32_0 = arith.constant 0 : i32
    return %arg1, %c0_i32 : i32, i32
  }
  func.func @transform_1(%arg0: i32, %arg1: i32) -> (i32, i32) {
    %c0_i32 = arith.constant 0 : i32
    %c0_i32_0 = arith.constant 0 : i32
    return %c0_i32, %arg0 : i32, i32
  }
  func.func @transform_2(%arg0: i32, %arg1: i32) -> (i32, i32) {
    %c0_i32 = arith.constant 0 : i32
    %c0_i32_0 = arith.constant 0 : i32
    return %c0_i32, %arg0 : i32, i32
  }
  func.func @transform_3(%arg0: i32, %arg1: i32) -> (i32, i32) {
    %c0_i32 = arith.constant 0 : i32
    return %arg1, %arg0 : i32, i32
  }
}

</mosaic_0001>

<llo_original>
// kernel: tpu_custom_call.1
$region0: #{tpu_custom_call.1}
  #allocation0 [shape = 'u32[]', space=smem, size = 0x4, offset = 0x4, fixed_abs, tag = 'smem constant byte address 0x4 - core index']
  #allocation1 [shape = 'u32[144,128]{1,0:T(1,128)}', space=vmem, size = 0x12000, scoped, tag = 'internal scratch']
  %s0 = inlined_call_operand.vmem [shape: f32[128,32], index: 0, kind: input, shape index: {}]
  %s1 = inlined_call_operand.vmem [shape: f32[32,96], index: 1, kind: input, shape index: {}]
  %s2 = inlined_call_operand.vmem [shape: f32[1,96], index: 2, kind: input, shape index: {}]
  %s3 = inlined_call_operand.vmem [shape: f32[128,96], index: 3, kind: output, shape index: {}]
  %s4 = sld [smem:[#allocation0]]
  $region22: #{tpu_custom_call.1} parent=0
    _
  %s6 = ssub.s32 1, %s4
  %s7 = scalar_select 0, %s6, %s4
  // Predicated region
  $region2: #{tpu_custom_call.1} parent=0 // pred_check
    _
  $region3: #{tpu_custom_call.1} parent=0 // pred_check_branch
    %9 = sbr.rel (0) target = $region5
  $region4: #{tpu_custom_call.1} parent=0 // pred_region
    _
  $region5: #{tpu_custom_call.1} parent=0 // pred_fallthru
    _
  // Predicated region
  $region6: #{tpu_custom_call.1} parent=0 // pred_check
    _
  $region7: #{tpu_custom_call.1} parent=0 // pred_check_branch
    %11 = sbr.rel (0) target = $region9
  $region8: #{tpu_custom_call.1} parent=0 // pred_region
    _
  $region9: #{tpu_custom_call.1} parent=0 // pred_fallthru
    _
  // Predicated region
  $region10: #{tpu_custom_call.1} parent=0 // pred_check
    _
  $region11: #{tpu_custom_call.1} parent=0 // pred_check_branch
    %13 = sbr.rel (0) target = $region13
  $region12: #{tpu_custom_call.1} parent=0 // pred_region
    _
  $region13: #{tpu_custom_call.1} parent=0 // pred_fallthru
    _
  %v15 = vld [vmem:[%s0] sm:$0xff]
  %v16 = vld [vmem:[%s0 + $0x8] sm:$0xff]
  %v17 = vld [vmem:[%s0 + $0x10] sm:$0xff]
  %v18 = vld [vmem:[%s0 + $0x18] sm:$0xff]
  %v19 = vld [vmem:[%s0 + $0x20] sm:$0xff]
  %v20 = vld [vmem:[%s0 + $0x28] sm:$0xff]
  %v21 = vld [vmem:[%s0 + $0x30] sm:$0xff]
  %v22 = vld [vmem:[%s0 + $0x38] sm:$0xff]
  %v23 = vld [vmem:[%s0 + $0x40] sm:$0xff]
  %v24 = vld [vmem:[%s0 + $0x48] sm:$0xff]
  %v25 = vld [vmem:[%s0 + $0x50] sm:$0xff]
  %v26 = vld [vmem:[%s0 + $0x58] sm:$0xff]
  %v27 = vld [vmem:[%s0 + $0x60] sm:$0xff]
  %v28 = vld [vmem:[%s0 + $0x68] sm:$0xff]
  %v29 = vld [vmem:[%s0 + $0x70] sm:$0xff]
  %v30 = vld [vmem:[%s0 + $0x78] sm:$0xff]
  %v31 = vpack.c.bf16 %v16, %v15
  %v32 = vpack.c.bf16 %v18, %v17
  %v33 = vpack.c.bf16 %v20, %v19
  %v34 = vpack.c.bf16 %v22, %v21
  %v35 = vpack.c.bf16 %v24, %v23
  %v36 = vpack.c.bf16 %v26, %v25
  %v37 = vpack.c.bf16 %v28, %v27
  %v38 = vpack.c.bf16 %v30, %v29
  %v39 = vld [vmem:[%s1] sm:$0xff]
  %v40 = vld [vmem:[%s1 + $0x8] sm:$0xff]
  %v41 = vld [vmem:[%s1 + $0x10] sm:$0xff]
  %v42 = vld [vmem:[%s1 + $0x18] sm:$0xff]
  %v43 = vpack.c.bf16 %v40, %v39
  %v44 = vpack.c.bf16 %v42, %v41
  %v45 = vld [vmem:[%s2] sm:$0x1]
  %v47 = vlaneseq
  %v48 = vshrl.u32 %v47, 7
  %v49 = vsub.s32 0, %v48
  %v50 = vrot.slane %v45, %v49
  %vm52 = vcmask 261120
  %v54 = vsel %vm52, %v31, 0
  %v57 = vsel %vm52, %v32, 0
  %v60 = vsel %vm52, %v33, 0
  %v63 = vsel %vm52, %v34, 0
  %v66 = vsel %vm52, %v35, 0
  %v69 = vsel %vm52, %v36, 0
  %v72 = vsel %vm52, %v37, 0
  %v75 = vsel %vm52, %v38, 0
  %77 = vmatprep.subr.bf16.mxu0 0
  %78 = vmatpush1.bf16.msra.mxu0 %v43
  %79 = vmatprep.subr.bf16.mxu0 0
  %80 = vmatpush1.bf16.msra.mxu0 %v44
  %81 = vmatprep.subr.bf16.mxu0 0
  %82 = vmatpush1.bf16.msra.mxu0 0
  %83 = vmatprep.subr.bf16.mxu0 0
  %84 = vmatpush1.bf16.msra.mxu0 0
  %85 = vmatprep.subr.bf16.mxu0 0
  %86 = vmatpush1.bf16.msra.mxu0 0
  %87 = vmatprep.subr.bf16.mxu0 0
  %88 = vmatpush1.bf16.msra.mxu0 0
  %89 = vmatprep.subr.bf16.mxu0 0
  %90 = vmatpush1.bf16.msra.mxu0 0
  %91 = vmatprep.subr.bf16.mxu0 0
  %92 = vmatpush1.bf16.msra.mxu0 0
  %93 = vmatprep.subr.bf16.mxu0 0
  %94 = vmatpush1.bf16.msra.mxu0 0
  %95 = vmatprep.subr.bf16.mxu0 0
  %96 = vmatpush1.bf16.msra.mxu0 0
  %97 = vmatprep.subr.bf16.mxu0 0
  %98 = vmatpush1.bf16.msra.mxu0 0
  %99 = vmatprep.subr.bf16.mxu0 0
  %100 = vmatpush1.bf16.msra.mxu0 0
  %101 = vmatprep.subr.bf16.mxu0 0
  %102 = vmatpush1.bf16.msra.mxu0 0
  %103 = vmatprep.subr.bf16.mxu0 0
  %104 = vmatpush1.bf16.msra.mxu0 0
  %105 = vmatprep.subr.bf16.mxu0 0
  %106 = vmatpush1.bf16.msra.mxu0 0
  %107 = vmatprep.subr.bf16.mxu0 0
  %108 = vmatpush1.bf16.msra.mxu0 0
  %109 = vmatprep.mubr.bf16.mxu0 0
  %110 = vmatmul.mubr.bf16.gmra.mrb[0].mxu0 %v54
  %v111 = vpop.f32.mrb[0].mxu0
  %v112 = vadd.f32 %v50, %v111
  %v113 = vpop.f32.mrb[0].mxu0
  %v114 = vpop.f32.mrb[0].mxu0
  %v115 = vadd.f32 %v50, %v114
  %v116 = vpop.f32.mrb[0].mxu0
  %117 = vmatprep.mubr.bf16.mxu0 0
  %118 = vmatmul.mubr.bf16.gmra.mrb[0].mxu0 %v57
  %v119 = vpop.f32.mrb[0].mxu0
  %v120 = vadd.f32 %v50, %v119
  %v121 = vpop.f32.mrb[0].mxu0
  %v122 = vpop.f32.mrb[0].mxu0
  %v123 = vadd.f32 %v50, %v122
  %v124 = vpop.f32.mrb[0].mxu0
  %125 = vmatprep.mubr.bf16.mxu0 0
  %126 = vmatmul.mubr.bf16.gmra.mrb[0].mxu0 %v60
  %v127 = vpop.f32.mrb[0].mxu0
  %v128 = vadd.f32 %v50, %v127
  %v129 = vpop.f32.mrb[0].mxu0
  %v130 = vpop.f32.mrb[0].mxu0
  %v131 = vadd.f32 %v50, %v130
  %v132 = vpop.f32.mrb[0].mxu0
  %133 = vmatprep.mubr.bf16.mxu0 0
  %134 = vmatmul.mubr.bf16.gmra.mrb[0].mxu0 %v63
  %v135 = vpop.f32.mrb[0].mxu0
  %v136 = vadd.f32 %v50, %v135
  %v137 = vpop.f32.mrb[0].mxu0
  %v138 = vpop.f32.mrb[0].mxu0
  %v139 = vadd.f32 %v50, %v138
  %v140 = vpop.f32.mrb[0].mxu0
  %141 = vmatprep.mubr.bf16.mxu0 0
  %142 = vmatmul.mubr.bf16.gmra.mrb[0].mxu0 %v66
  %v143 = vpop.f32.mrb[0].mxu0
  %v144 = vadd.f32 %v50, %v143
  %v145 = vpop.f32.mrb[0].mxu0
  %v146 = vpop.f32.mrb[0].mxu0
  %v147 = vadd.f32 %v50, %v146
  %v148 = vpop.f32.mrb[0].mxu0
  %149 = vmatprep.mubr.bf16.mxu0 0
  %150 = vmatmul.mubr.bf16.gmra.mrb[0].mxu0 %v69
  %v151 = vpop.f32.mrb[0].mxu0
  %v152 = vadd.f32 %v50, %v151
  %v153 = vpop.f32.mrb[0].mxu0
  %v154 = vpop.f32.mrb[0].mxu0
  %v155 = vadd.f32 %v50, %v154
  %v156 = vpop.f32.mrb[0].mxu0
  %157 = vmatprep.mubr.bf16.mxu0 0
  %158 = vmatmul.mubr.bf16.gmra.mrb[0].mxu0 %v72
  %v159 = vpop.f32.mrb[0].mxu0
  %v160 = vadd.f32 %v50, %v159
  %v161 = vpop.f32.mrb[0].mxu0
  %v162 = vpop.f32.mrb[0].mxu0
  %v163 = vadd.f32 %v50, %v162
  %v164 = vpop.f32.mrb[0].mxu0
  %165 = vmatprep.mubr.bf16.mxu0 0
  %166 = vmatmul.mubr.bf16.gmra.mrb[0].mxu0 %v75
  %v167 = vpop.f32.mrb[0].mxu0
  %v168 = vadd.f32 %v50, %v167
  %v169 = vpop.f32.mrb[0].mxu0
  %v170 = vpop.f32.mrb[0].mxu0
  %v171 = vadd.f32 %v50, %v170
  %v172 = vpop.f32.mrb[0].mxu0
  %173 = vdwg.mxu0
  %vm174 = vcmask 785408
  %175 = vst.msk [vmem:[%s3] sm:$0xff] %vm174, %v112
  %176 = vst.msk [vmem:[%s3 + $0x8] sm:$0xff] %vm174, %v115
  %177 = vst.msk [vmem:[%s3 + $0x10] sm:$0xff] %vm174, %v120
  %178 = vst.msk [vmem:[%s3 + $0x18] sm:$0xff] %vm174, %v123
  %179 = vst.msk [vmem:[%s3 + $0x20] sm:$0xff] %vm174, %v128
  %180 = vst.msk [vmem:[%s3 + $0x28] sm:$0xff] %vm174, %v131
  %181 = vst.msk [vmem:[%s3 + $0x30] sm:$0xff] %vm174, %v136
  %182 = vst.msk [vmem:[%s3 + $0x38] sm:$0xff] %vm174, %v139
  %183 = vst.msk [vmem:[%s3 + $0x40] sm:$0xff] %vm174, %v144
  %184 = vst.msk [vmem:[%s3 + $0x48] sm:$0xff] %vm174, %v147
  %185 = vst.msk [vmem:[%s3 + $0x50] sm:$0xff] %vm174, %v152
  %186 = vst.msk [vmem:[%s3 + $0x58] sm:$0xff] %vm174, %v155
  %187 = vst.msk [vmem:[%s3 + $0x60] sm:$0xff] %vm174, %v160
  %188 = vst.msk [vmem:[%s3 + $0x68] sm:$0xff] %vm174, %v163
  %189 = vst.msk [vmem:[%s3 + $0x70] sm:$0xff] %vm174, %v168
  %190 = vst.msk [vmem:[%s3 + $0x78] sm:$0xff] %vm174, %v171
  // Predicated region
  $region14: #{tpu_custom_call.1} parent=0 // pred_check
    _
  $region15: #{tpu_custom_call.1} parent=0 // pred_check_branch
    %192 = sbr.rel (0) target = $region17
  $region16: #{tpu_custom_call.1} parent=0 // pred_region
    _
  $region17: #{tpu_custom_call.1} parent=0 // pred_fallthru
    _
  // Predicated region
  $region18: #{tpu_custom_call.1} parent=0 // pred_check
    _
  $region19: #{tpu_custom_call.1} parent=0 // pred_check_branch
    %194 = sbr.rel (0) target = $region21
  $region20: #{tpu_custom_call.1} parent=0 // pred_region
    _
  $region21: #{tpu_custom_call.1} parent=0 // pred_fallthru
    _

</llo_original>
